<compile_context>
chip_gen: v7x
topology: tpu7x:2x2x1
jax: 0.10.0
libtpu: 0.0.40
codegen_flags: <defaults>
</compile_context>

<pallas_src>
import functools

import numpy as np
import jax
import jax.numpy as jnp
from jax.experimental import pallas as pl
from jax.experimental.pallas import tpu as pltpu


# ----------------------------------------------------------------------------
# Deterministic filter setup (pywt.Wavelet('db1') analysis filters).
# prep_filt_afb1d reverses the decomposition filters because torch conv2d is a
# cross-correlation; we bake the reversed taps straight into the kernel trace.
# ----------------------------------------------------------------------------
_S = 1.0 / np.sqrt(2.0)
_DB1_DEC_LO = np.array([_S, _S], dtype=np.float64)     # pywt dec_lo
_DB1_DEC_HI = np.array([-_S, _S], dtype=np.float64)    # pywt dec_hi


def _prep_filt_afb1d(h0, h1):
    h0 = np.asarray(h0, dtype=np.float64).ravel()[::-1].copy()
    h1 = np.asarray(h1, dtype=np.float64).ravel()[::-1].copy()
    return h0.astype(np.float32), h1.astype(np.float32)


# ----------------------------------------------------------------------------
# Pallas kernel: all J analysis levels for a block of TC (n, c) channels.
#   x_ref         : (TC, H*W)       input block (flattened image per channel)
#   ll_ref        : (TC, H*W)       final low-pass (after level J)
#   highs_refs[j] : (TC, 3*H*W)     [LH | HL | HH] of level j+1, lane-packed
# Filter taps are static Python floats baked into the trace (2 taps for db1).
# ----------------------------------------------------------------------------
def _swt_kernel(x_ref, ll_ref, *highs_refs,
                h0_row, h1_row, h0_col, h1_col, H, W, J):
    HW = H * W
    cur = x_ref[...]                                    # (TC, HW) float32
    TC = cur.shape[0]

    # Hoisted shift machinery: built once, reused for every level.
    lane = jax.lax.broadcasted_iota(jnp.int32, (TC, HW), 1)
    w_keep = (lane % W) < (W - 1)        # False on last column of each image row
    h_keep = lane < (H - 1) * W          # False on last image row
    zeros = jnp.zeros((TC, HW), jnp.float32)
    aligned = (HW % 128 == 0)

    def shift_w(a):
        # out[.., h, w] = a[.., h, w+1], trailing zero column (AFB pad=(0,1)).
        if W == 1:
            return zeros
        if aligned:
            r = pltpu.roll(a, HW - 1, 1)        # lane rotate on the XLU
        else:
            r = jnp.concatenate([a[:, 1:], zeros[:, :1]], axis=1)
        return jnp.where(w_keep, r, zeros)

    def shift_h(a):
        # out[.., h, w] = a[.., h+1, w], trailing zero row (AFB pad=(0,1)).
        if H == 1:
            return zeros
        if aligned:
            r = pltpu.roll(a, HW - W, 1)
        else:
            r = jnp.concatenate([a[:, W:], zeros[:, :W]], axis=1)
        return jnp.where(h_keep, r, zeros)

    for j in range(J):                   # fused levels; LL never leaves VMEM
        nxt = shift_w(cur)
        row_lo = h0_row[0] * cur + h0_row[1] * nxt
        row_hi = h1_row[0] * cur + h1_row[1] * nxt
        lo_dn = shift_h(row_lo)
        hi_dn = shift_h(row_hi)
        hr = highs_refs[j]
        hdt = hr.dtype
        # Dense lane-slab stores, HBM layout == (N, C, 3, H, W).
        hr[:, 0:HW] = (h1_col[0] * row_lo + h1_col[1] * lo_dn).astype(hdt)        # LH
        hr[:, HW:2 * HW] = (h0_col[0] * row_hi + h0_col[1] * hi_dn).astype(hdt)   # HL
        hr[:, 2 * HW:3 * HW] = (h1_col[0] * row_hi + h1_col[1] * hi_dn).astype(hdt)  # HH
        cur = h0_col[0] * row_lo + h0_col[1] * lo_dn                               # LL
    ll_ref[...] = cur.astype(ll_ref.dtype)


# ----------------------------------------------------------------------------
# Block-size / VMEM-budget selection (per TPU generation).
# ----------------------------------------------------------------------------
def _vmem_config():
    cap = 64 * 2**20
    try:
        cap = int(pltpu.get_tpu_info().vmem_capacity_bytes)
    except Exception:
        pass
    if cap >= 96 * 2**20:                 # v5e / v6e class (128 MiB VMEM)
        return 48 * 2**20, 96 * 2**20     # (block budget, vmem_limit_bytes)
    return 12 * 2**20, 32 * 2**20         # v7x class (64 MiB) / unknown


def _pick_tc(nc, hw, J, budget_bytes):
    """Channels per grid step: largest divisor of nc that (a) is a multiple of
    8 (sublane density + BlockSpec rule) or nc itself, (b) fits the VMEM
    budget with double-buffered blocks, and (c) leaves >= 4 grid steps when
    possible (>= 2 per v7x TensorCore keeps the output DMA pipelined)."""
    per_chan = (2 + 3 * J) * hw * 4 * 2 + 8 * hw * 4   # dbl-buffered blocks + temps
    cap = max(1, budget_bytes // per_chan)
    cands = [d for d in range(8, nc + 1, 8) if nc % d == 0]
    if nc not in cands:
        cands.append(nc)                  # full-dim fallback (always legal)
    cands.sort()
    feasible = [d for d in cands if d <= cap]
    if not feasible:
        # TODO(synk): H-tiled variant with a J-row halo for images whose
        # per-channel working set alone exceeds the VMEM budget.
        feasible = [cands[0]]
    for min_steps in (4, 2, 1):
        sel = [d for d in feasible if nc // d >= min_steps]
        if sel:
            return max(sel)
    return feasible[0]


def _swt_forward_pallas(x_nchw, h0_row, h1_row, h0_col, h1_col, J,
                        high_dtype=jnp.float32):
    """All J AFB2D levels (mode='zero', dilation=1) in a single pallas_call.

    x_nchw: (N, C, H, W) float32.  Returns (ll, [highs_1, ..., highs_J]) with
    ll: (N, C, H, W) and highs_j: (N, C, 3, H, W), matching SWTForward.
    """
    N, C, H, W = x_nchw.shape
    NC, HW = N * C, H * W
    x = x_nchw.reshape(NC, HW)            # free contiguous reshape: lane = H*W

    budget, vmem_limit = _vmem_config()
    TC = _pick_tc(NC, HW, J, budget)
    grid = (NC // TC,)

    kernel = functools.partial(
        _swt_kernel,
        h0_row=tuple(float(v) for v in h0_row),
        h1_row=tuple(float(v) for v in h1_row),
        h0_col=tuple(float(v) for v in h0_col),
        h1_col=tuple(float(v) for v in h1_col),
        H=H, W=W, J=J)

    out_shape = (jax.ShapeDtypeStruct((NC, HW), jnp.float32),) + tuple(
        jax.ShapeDtypeStruct((NC, 3 * HW), high_dtype) for _ in range(J))
    out_specs = (pl.BlockSpec((TC, HW), lambda i: (i, 0)),) + tuple(
        pl.BlockSpec((TC, 3 * HW), lambda i: (i, 0)) for _ in range(J))

    # Memory-bound kernel: ~18 flops per pixel per level, 1 input read plus
    # (1 + 3J) image-sized output writes.
    cost = pl.CostEstimate(
        flops=18 * NC * J * HW,
        transcendentals=0,
        bytes_accessed=4 * NC * HW * (2 + 3 * J))

    outs = pl.pallas_call(
        kernel,
        out_shape=out_shape,
        grid=grid,
        in_specs=[pl.BlockSpec((TC, HW), lambda i: (i, 0))],
        out_specs=out_specs,
        compiler_params=pltpu.CompilerParams(
            dimension_semantics=("parallel",),
            vmem_limit_bytes=vmem_limit),
        cost_estimate=cost,
    )(x)

    ll = outs[0].reshape(N, C, H, W)                      # free reshapes
    highs = [o.reshape(N, C, 3, H, W) for o in outs[1:]]
    return ll, highs


class SWTForward:
    """JAX/Pallas re-implementation of networks.SWT.SWTForward (forward only)."""

    def __init__(self, J=1, wave='db1', mode='zero', high_dtype=jnp.float32):
        if wave != 'db1':
            # TODO(synk): only db1/Haar filters are built in (no pywt dependency).
            raise NotImplementedError("only wave='db1' supported")
        if mode != 'zero':
            # TODO(synk): symmetric/periodic/reflect/replicate padding modes
            # are not implemented.
            raise NotImplementedError("only mode='zero' supported")
        h0_col, h1_col = _prep_filt_afb1d(_DB1_DEC_LO, _DB1_DEC_HI)
        # SWTForward registers identical row/col filters for db1, so AFB2D's
        # internal (row, col) argument swap is a no-op here.
        self.h0_col, self.h1_col = h0_col, h1_col
        self.h0_row, self.h1_row = h0_col, h1_col
        self.J = J
        self.mode = mode
        # high_dtype=jnp.bfloat16 cuts ~40% of HBM write traffic but no longer
        # bit-matches the f32 PyTorch reference; default keeps f32.
        self.high_dtype = high_dtype

    def __call__(self, x):
        ll, yh = _swt_forward_pallas(x.astype(jnp.float32),
                                     self.h0_row, self.h1_row,
                                     self.h0_col, self.h1_col, self.J,
                                     high_dtype=self.high_dtype)
        return ll, yh


# ----------------------------------------------------------------------------
# Pure-JAX reference of one AFB2D level (mode='zero', dilation=1), for checks.
# ----------------------------------------------------------------------------
def _ref_level(x, h0_col, h1_col, h0_row, h1_row):
    N, C, H, W = x.shape
    L = int(h0_row.shape[0])
    pad_lo, pad_hi = L // 2 - 1, L // 2
    xr = jnp.pad(x, ((0, 0), (0, 0), (0, 0), (pad_lo, pad_hi)))
    lo = sum(h0_row[k] * xr[..., k:k + W] for k in range(L))
    hi = sum(h1_row[k] * xr[..., k:k + W] for k in range(L))

    def colf(t):
        tp = jnp.pad(t, ((0, 0), (0, 0), (pad_lo, pad_hi), (0, 0)))
        l = sum(h0_col[k] * tp[..., k:k + H, :] for k in range(L))
        h = sum(h1_col[k] * tp[..., k:k + H, :] for k in range(L))
        return l, h

    ll, lh = colf(lo)
    hl, hh = colf(hi)
    return ll, jnp.stack([lh, hl, hh], axis=2)


def _check(x, J):
    swt = SWTForward(J=J, wave='db1', mode='zero')
    ll, yh = swt(x)
    ll = jax.block_until_ready(ll)
    yh = [jax.block_until_ready(h) for h in yh]

    N, C, H, W = x.shape
    assert ll.shape == (N, C, H, W)
    assert len(yh) == J and all(h.shape == (N, C, 3, H, W) for h in yh)

    ll_ref = x
    for j in range(J):
        ll_ref, hi_ref = _ref_level(ll_ref, swt.h0_col, swt.h1_col,
                                    swt.h0_row, swt.h1_row)
        np.testing.assert_allclose(np.asarray(yh[j]), np.asarray(hi_ref),
                                   rtol=1e-5, atol=1e-5)
    np.testing.assert_allclose(np.asarray(ll), np.asarray(ll_ref),
                               rtol=1e-5, atol=1e-5)


if __name__ == "__main__":
    key = jax.random.PRNGKey(0)
    k1, k2, k3 = jax.random.split(key, 3)

    # Primary shape: H*W = 256 (multiple of 128) exercises the lane-dense
    # pltpu.roll path; J=2 exercises the fused multi-level path.
    x = jax.random.normal(k1, (2, 4, 16, 16), jnp.float32)
    _check(x, J=1)
    _check(x, J=2)

    # Wider lane row (H*W = 2048) and a channel count not divisible by 8.
    x2 = jax.random.normal(k2, (1, 2, 16, 128), jnp.float32)
    _check(x2, J=1)

    # Non-128-multiple H*W (= 96) exercises the slice+concat fallback path.
    x3 = jax.random.normal(k3, (1, 8, 8, 12), jnp.float32)
    _check(x3, J=2)

    print("KERNEL_OK")
</pallas_src>

<mosaic_0001>
module attributes {stable_mosaic.version = 11 : i64} {
  func.func @_swt_kernel(%arg0: i32, %arg1: memref<8x256xf32, #tpu.memory_space<vmem>>, %arg2: memref<8x256xf32, #tpu.memory_space<vmem>>, %arg3: memref<8x768xf32, #tpu.memory_space<vmem>>) attributes {dimension_semantics = [#tpu.dimension_semantics<parallel>], iteration_bounds = array<i64: 1>, scalar_prefetch = 0 : i64, scratch_operands = 0 : i64, tpu.core_type = #tpu.core_type<tc>, window_params = [{transform_indices = @transform_0, window_bounds = array<i64: 8, 256>}, {transform_indices = @transform_1, window_bounds = array<i64: 8, 256>}, {transform_indices = @transform_2, window_bounds = array<i64: 8, 768>}]} {
    %c0 = arith.constant 0 : index
    %c0_0 = arith.constant 0 : index
    %0 = vector.load %arg1[%c0, %c0_0] : memref<8x256xf32, #tpu.memory_space<vmem>>, vector<8x256xf32>
    %1 = tpu.iota {dimensions = array<i32: 1>} : vector<8x256xi32>
    %c16_i32 = arith.constant 16 : i32
    %c0_i32 = arith.constant 0 : i32
    %2 = arith.cmpi eq, %c16_i32, %c0_i32 : i32
    %c1_i32 = arith.constant 1 : i32
    %3 = arith.select %2, %c1_i32, %c16_i32 : i32
    %4 = vector.broadcast %3 : i32 to vector<8x256xi32>
    %5 = arith.remsi %1, %4 : vector<8x256xi32>
    %c0_i32_1 = arith.constant 0 : i32
    %6 = vector.broadcast %c0_i32_1 : i32 to vector<8x256xi32>
    %7 = arith.cmpi ne, %5, %6 : vector<8x256xi32>
    %c0_i32_2 = arith.constant 0 : i32
    %8 = vector.broadcast %c0_i32_2 : i32 to vector<8x256xi32>
    %9 = arith.cmpi slt, %5, %8 : vector<8x256xi32>
    %c0_i32_3 = arith.constant 0 : i32
    %10 = arith.cmpi slt, %3, %c0_i32_3 : i32
    %11 = vector.broadcast %10 : i1 to vector<8x256xi1>
    %12 = vector.broadcast %11 : vector<8x256xi1> to vector<8x256xi1>
    %13 = arith.xori %9, %12 : vector<8x256xi1>
    %14 = arith.andi %13, %7 : vector<8x256xi1>
    %15 = vector.broadcast %3 : i32 to vector<8x256xi32>
    %16 = arith.addi %5, %15 : vector<8x256xi32>
    %17 = arith.select %14, %16, %5 : vector<8x256xi1>, vector<8x256xi32>
    %c15_i32 = arith.constant 15 : i32
    %18 = vector.broadcast %c15_i32 : i32 to vector<8x256xi32>
    %19 = arith.cmpi slt, %17, %18 : vector<8x256xi32>
    %c240_i32 = arith.constant 240 : i32
    %20 = vector.broadcast %c240_i32 : i32 to vector<8x256xi32>
    %21 = arith.cmpi slt, %1, %20 : vector<8x256xi32>
    %cst = arith.constant 0.000000e+00 : f32
    %22 = vector.broadcast %cst : f32 to vector<8x256xf32>
    %c255_i32 = arith.constant 255 : i32
    %23 = tpu.dynamic_rotate %0 by %c255_i32 dim 1 : vector<8x256xf32>, i32 -> vector<8x256xf32>
    %24 = arith.select %19, %23, %22 : vector<8x256xi1>, vector<8x256xf32>
    %cst_4 = arith.constant 0.707106769 : f32
    %25 = vector.broadcast %cst_4 : f32 to vector<8x256xf32>
    %26 = arith.mulf %25, %0 : vector<8x256xf32>
    %cst_5 = arith.constant 0.707106769 : f32
    %27 = vector.broadcast %cst_5 : f32 to vector<8x256xf32>
    %28 = arith.mulf %27, %24 : vector<8x256xf32>
    %29 = arith.addf %26, %28 : vector<8x256xf32>
    %cst_6 = arith.constant 0.707106769 : f32
    %30 = vector.broadcast %cst_6 : f32 to vector<8x256xf32>
    %31 = arith.mulf %30, %0 : vector<8x256xf32>
    %cst_7 = arith.constant -0.707106769 : f32
    %32 = vector.broadcast %cst_7 : f32 to vector<8x256xf32>
    %33 = arith.mulf %32, %24 : vector<8x256xf32>
    %34 = arith.addf %31, %33 : vector<8x256xf32>
    %c240_i32_8 = arith.constant 240 : i32
    %35 = tpu.dynamic_rotate %29 by %c240_i32_8 dim 1 : vector<8x256xf32>, i32 -> vector<8x256xf32>
    %36 = arith.select %21, %35, %22 : vector<8x256xi1>, vector<8x256xf32>
    %c240_i32_9 = arith.constant 240 : i32
    %37 = tpu.dynamic_rotate %34 by %c240_i32_9 dim 1 : vector<8x256xf32>, i32 -> vector<8x256xf32>
    %38 = arith.select %21, %37, %22 : vector<8x256xi1>, vector<8x256xf32>
    %cst_10 = arith.constant 0.707106769 : f32
    %39 = vector.broadcast %cst_10 : f32 to vector<8x256xf32>
    %40 = arith.mulf %39, %29 : vector<8x256xf32>
    %cst_11 = arith.constant -0.707106769 : f32
    %41 = vector.broadcast %cst_11 : f32 to vector<8x256xf32>
    %42 = arith.mulf %41, %36 : vector<8x256xf32>
    %43 = arith.addf %40, %42 : vector<8x256xf32>
    %c0_12 = arith.constant 0 : index
    %c0_13 = arith.constant 0 : index
    %44 = vector.load %arg3[%c0_12, %c0_13] : memref<8x768xf32, #tpu.memory_space<vmem>>, vector<8x256xf32>
    tpu.vector_store %arg3[%c0_12, %c0_13], %43 {strides = array<i32>} : memref<8x768xf32, #tpu.memory_space<vmem>>, vector<8x256xf32>,
    %cst_14 = arith.constant 0.707106769 : f32
    %45 = vector.broadcast %cst_14 : f32 to vector<8x256xf32>
    %46 = arith.mulf %45, %34 : vector<8x256xf32>
    %cst_15 = arith.constant 0.707106769 : f32
    %47 = vector.broadcast %cst_15 : f32 to vector<8x256xf32>
    %48 = arith.mulf %47, %38 : vector<8x256xf32>
    %49 = arith.addf %46, %48 : vector<8x256xf32>
    %c0_16 = arith.constant 0 : index
    %c256 = arith.constant 256 : index
    %50 = vector.load %arg3[%c0_16, %c256] : memref<8x768xf32, #tpu.memory_space<vmem>>, vector<8x256xf32>
    tpu.vector_store %arg3[%c0_16, %c256], %49 {strides = array<i32>} : memref<8x768xf32, #tpu.memory_space<vmem>>, vector<8x256xf32>,
    %cst_17 = arith.constant 0.707106769 : f32
    %51 = vector.broadcast %cst_17 : f32 to vector<8x256xf32>
    %52 = arith.mulf %51, %34 : vector<8x256xf32>
    %cst_18 = arith.constant -0.707106769 : f32
    %53 = vector.broadcast %cst_18 : f32 to vector<8x256xf32>
    %54 = arith.mulf %53, %38 : vector<8x256xf32>
    %55 = arith.addf %52, %54 : vector<8x256xf32>
    %c0_19 = arith.constant 0 : index
    %c512 = arith.constant 512 : index
    %56 = vector.load %arg3[%c0_19, %c512] : memref<8x768xf32, #tpu.memory_space<vmem>>, vector<8x256xf32>
    tpu.vector_store %arg3[%c0_19, %c512], %55 {strides = array<i32>} : memref<8x768xf32, #tpu.memory_space<vmem>>, vector<8x256xf32>,
    %cst_20 = arith.constant 0.707106769 : f32
    %57 = vector.broadcast %cst_20 : f32 to vector<8x256xf32>
    %58 = arith.mulf %57, %29 : vector<8x256xf32>
    %cst_21 = arith.constant 0.707106769 : f32
    %59 = vector.broadcast %cst_21 : f32 to vector<8x256xf32>
    %60 = arith.mulf %59, %36 : vector<8x256xf32>
    %61 = arith.addf %58, %60 : vector<8x256xf32>
    %c0_22 = arith.constant 0 : index
    %c0_23 = arith.constant 0 : index
    %62 = vector.load %arg2[%c0_22, %c0_23] : memref<8x256xf32, #tpu.memory_space<vmem>>, vector<8x256xf32>
    tpu.vector_store %arg2[%c0_22, %c0_23], %61 {strides = array<i32>} : memref<8x256xf32, #tpu.memory_space<vmem>>, vector<8x256xf32>,
    return
  }
  func.func @transform_0(%arg0: i32) -> (i32, i32) {
    %c0_i32 = arith.constant 0 : i32
    %c0_i32_0 = arith.constant 0 : i32
    return %arg0, %c0_i32 : i32, i32
  }
  func.func @transform_1(%arg0: i32) -> (i32, i32) {
    %c0_i32 = arith.constant 0 : i32
    %c0_i32_0 = arith.constant 0 : i32
    return %arg0, %c0_i32 : i32, i32
  }
  func.func @transform_2(%arg0: i32) -> (i32, i32) {
    %c0_i32 = arith.constant 0 : i32
    %c0_i32_0 = arith.constant 0 : i32
    return %arg0, %c0_i32 : i32, i32
  }
}

</mosaic_0001>

<llo_original>
// kernel: tpu_custom_call.1
$region0: #{tpu_custom_call.1}
  #allocation0 [shape = 'u32[]', space=smem, size = 0x4, offset = 0x4, fixed_abs, tag = 'smem constant byte address 0x4 - core index']
  #allocation1 [shape = 'u32[144,128]{1,0:T(1,128)}', space=vmem, size = 0x12000, scoped, tag = 'internal scratch']
  %s0 = inlined_call_operand.hbm [shape: f32[8,256], index: 0, kind: input, shape index: {}]
  %s1 = inlined_call_operand.hbm [shape: f32[8,256], index: 1, kind: output, shape index: {0}]
  %s2 = inlined_call_operand.hbm [shape: f32[8,768], index: 2, kind: output, shape index: {1}]
  %3 = xla_tuple %s1, %s2
  %s4 = sld [smem:[#allocation0]]
  $region26: #{tpu_custom_call.1} parent=0
    _
  %s6 = ssub.s32 1, %s4
  %s7 = scalar_select 0, %s6, %s4
  $region1: #{tpu_custom_call.1} parent=0
    #allocation2 [shape = 'u8[8192]{0}', space=vmem, size = 0x2000, scoped, tag = 'input window, operand 0, single buffered']
    #allocation3 [shape = 's32[1]{0}', space=sflag, size = 0x4, scoped, tag = 'scoped memory for tpu_custom_call.1']
    #allocation4 [shape = 's32[1]{0}', space=sflag, size = 0x4, scoped, tag = 'scoped memory for tpu_custom_call.1']
    #allocation5 [shape = 'u8[8192]{0}', space=vmem, size = 0x2000, scoped, tag = 'output window, operand 0, single buffered']
    #allocation6 [shape = 'u8[24576]{0}', space=vmem, size = 0x6000, scoped, tag = 'output window, operand 1, single buffered']
    #allocation7 [shape = 's32[1]{0}', space=sflag, size = 0x4, scoped, tag = 'scoped memory for tpu_custom_call.1']
    %8 = vsyncpa [#allocation3], 0
    %9 = vsyncpa [#allocation4], 0
    %10 = vsyncpa [#allocation7], 0
    // Predicated region
    $region2: #{tpu_custom_call.1} parent=1 // pred_check
      _
    $region3: #{tpu_custom_call.1} parent=1 // pred_check_branch
      %12 = sbr.rel (0) target = $region5
    $region4: #{tpu_custom_call.1} parent=1 // pred_region
      %s14 = ssub.s32 256, 256
      %15 = vsyncadd [#allocation3], %s14
      %s17 = sshll.u32 [#allocation2], 4
      %s18 = int_to_ptr.vmem [resolvable:$true] %s17
      %20 = dma.hbm_to_vmem [thread:$0]  %s0, 256, %s18, [#allocation3]
    $region5: #{tpu_custom_call.1} parent=1 // pred_fallthru
      _
    // Predicated region
    $region6: #{tpu_custom_call.1} parent=1 // pred_check
      _
    $region7: #{tpu_custom_call.1} parent=1 // pred_check_branch
      %22 = sbr.rel (0) target = $region9
    $region8: #{tpu_custom_call.1} parent=1 // pred_region
      %23 = dma.done [#allocation3], 256
    $region9: #{tpu_custom_call.1} parent=1 // pred_fallthru
      _
    %v24 = vld [vmem:[#allocation2] sm:$0xff]
    %v25 = vld [vmem:[#allocation2 + $0x8] sm:$0xff]
    %v26 = vlaneseq
    %v27 = vand.u32 %v26, 127
    %v28 = vadd.s32 %v27, 128
    %vm29 = vcmp.lt.s32.totalorder %v27, 0
    %v30 = vsub.s32 0, %v27
    %v31 = vsel %vm29, %v30, %v27
    %v32 = vshrl.u32 %v31, 4
    %v33 = vand.u32 %v31, 15
    %v34 = vsub.s32 0, %v33
    %v35 = vsel %vm29, %v34, %v33
    %vm36 = vcmp.lt.s32.totalorder %v28, 0
    %v37 = vsub.s32 0, %v28
    %v38 = vsel %vm36, %v37, %v28
    %v39 = vshrl.u32 %v38, 4
    %v40 = vand.u32 %v38, 15
    %v41 = vsub.s32 0, %v40
    %v42 = vsel %vm36, %v41, %v40
    %vm43 = vcmp.ne.s32.totalorder %v35, 0
    %vm44 = vcmp.ne.s32.totalorder %v42, 0
    %vm45 = vcmp.lt.s32.totalorder %v35, 0
    %vm46 = vcmp.lt.s32.totalorder %v42, 0
    %vm47 = vmand %vm45, %vm43
    %vm48 = vmand %vm46, %vm44
    %v49 = vadd.s32 %v35, 16
    %v50 = vadd.s32 %v42, 16
    %v51 = vsel %vm47, %v49, %v35
    %v52 = vsel %vm48, %v50, %v42
    %vm53 = vcmp.lt.s32.totalorder %v51, 15
    %vm54 = vcmp.lt.s32.totalorder %v52, 15
    %vm55 = vcmp.lt.s32.totalorder %v27, 240
    %vm56 = vcmp.lt.s32.totalorder %v28, 240
    %57 = vrot.lane.b32.xlu0 %v24, 127
    %v58 = vpop.permute.xlu0 %57
    %59 = vrot.lane.b32.xlu0 %v25, 127
    %v60 = vpop.permute.xlu0 %59
    %vm61 = vcmp.lt.s32.totalorder %v27, 127
    %v62 = vsel %vm61, %v58, %v60
    %v63 = vsel %vm61, %v60, %v58
    %v64 = vsel %vm53, %v62, 0.0
    %v65 = vsel %vm54, %v63, 0.0
    %v66 = vmul.f32 %v24, 0.70710677
    %v67 = vmul.f32 %v25, 0.70710677
    %v68 = vmul.f32 %v64, 0.70710677
    %v69 = vmul.f32 %v65, 0.70710677
    %v70 = vadd.f32 %v66, %v68
    %v71 = vadd.f32 %v67, %v69
    %v72 = vmul.f32 %v64, -0.70710677
    %v73 = vmul.f32 %v65, -0.70710677
    %v74 = vadd.f32 %v66, %v72
    %v75 = vadd.f32 %v67, %v73
    %76 = vrot.lane.b32.xlu0 %v70, 112
    %v77 = vpop.permute.xlu0 %76
    %78 = vrot.lane.b32.xlu0 %v71, 112
    %v79 = vpop.permute.xlu0 %78
    %vm80 = vcmp.lt.s32.totalorder %v27, 112
    %v81 = vsel %vm80, %v77, %v79
    %v82 = vsel %vm80, %v79, %v77
    %v83 = vsel %vm55, %v81, 0.0
    %v84 = vsel %vm56, %v82, 0.0
    %85 = vrot.lane.b32.xlu0 %v74, 112
    %v86 = vpop.permute.xlu0 %85
    %87 = vrot.lane.b32.xlu0 %v75, 112
    %v88 = vpop.permute.xlu0 %87
    %v89 = vsel %vm80, %v86, %v88
    %v90 = vsel %vm80, %v88, %v86
    %v91 = vsel %vm55, %v89, 0.0
    %v92 = vsel %vm56, %v90, 0.0
    %v93 = vmul.f32 %v70, 0.70710677
    %v94 = vmul.f32 %v71, 0.70710677
    %v95 = vmul.f32 %v83, -0.70710677
    %v96 = vmul.f32 %v84, -0.70710677
    %v97 = vadd.f32 %v93, %v95
    %v98 = vadd.f32 %v94, %v96
    %99 = vst [vmem:[#allocation6] sm:$0xff] %v97
    %100 = vst [vmem:[#allocation6 + $0x8] sm:$0xff] %v98
    %v101 = vmul.f32 %v74, 0.70710677
    %v102 = vmul.f32 %v75, 0.70710677
    %v103 = vmul.f32 %v91, 0.70710677
    %v104 = vmul.f32 %v92, 0.70710677
    %v105 = vadd.f32 %v101, %v103
    %v106 = vadd.f32 %v102, %v104
    %107 = vst [vmem:[#allocation6 + $0x10] sm:$0xff] %v105
    %108 = vst [vmem:[#allocation6 + $0x18] sm:$0xff] %v106
    %v109 = vmul.f32 %v91, -0.70710677
    %v110 = vmul.f32 %v92, -0.70710677
    %v111 = vadd.f32 %v101, %v109
    %v112 = vadd.f32 %v102, %v110
    %113 = vst [vmem:[#allocation6 + $0x20] sm:$0xff] %v111
    %114 = vst [vmem:[#allocation6 + $0x28] sm:$0xff] %v112
    %v115 = vmul.f32 %v83, 0.70710677
    %v116 = vmul.f32 %v84, 0.70710677
    %v117 = vadd.f32 %v93, %v115
    %v118 = vadd.f32 %v94, %v116
    %119 = vst [vmem:[#allocation5] sm:$0xff] %v117
    %120 = vst [vmem:[#allocation5 + $0x8] sm:$0xff] %v118
    // Predicated region
    $region10: #{tpu_custom_call.1} parent=1 // pred_check
      _
    $region11: #{tpu_custom_call.1} parent=1 // pred_check_branch
      %122 = sbr.rel (0) target = $region13
    $region12: #{tpu_custom_call.1} parent=1 // pred_region
      %s124 = ssub.s32 256, 256
      %125 = vsyncadd [#allocation4], %s124
      %s127 = sshll.u32 [#allocation5], 4
      %s128 = int_to_ptr.vmem [resolvable:$true] %s127
      %130 = dma.vmem_to_hbm [thread:$0]  %s128, 256, %s1, [#allocation4]
    $region13: #{tpu_custom_call.1} parent=1 // pred_fallthru
      _
    // Predicated region
    $region14: #{tpu_custom_call.1} parent=1 // pred_check
      _
    $region15: #{tpu_custom_call.1} parent=1 // pred_check_branch
      %132 = sbr.rel (0) target = $region17
    $region16: #{tpu_custom_call.1} parent=1 // pred_region
      %s134 = ssub.s32 768, 768
      %135 = vsyncadd [#allocation7], %s134
      %s137 = sshll.u32 [#allocation6], 4
      %s138 = int_to_ptr.vmem [resolvable:$true] %s137
      %140 = dma.vmem_to_hbm [thread:$0]  %s138, 768, %s2, [#allocation7]
    $region17: #{tpu_custom_call.1} parent=1 // pred_fallthru
      _
    // Predicated region
    $region18: #{tpu_custom_call.1} parent=1 // pred_check
      _
    $region19: #{tpu_custom_call.1} parent=1 // pred_check_branch
      %142 = sbr.rel (0) target = $region21
    $region20: #{tpu_custom_call.1} parent=1 // pred_region
      %143 = dma.done [#allocation4], 256
    $region21: #{tpu_custom_call.1} parent=1 // pred_fallthru
      _
    // Predicated region
    $region22: #{tpu_custom_call.1} parent=1 // pred_check
      _
    $region23: #{tpu_custom_call.1} parent=1 // pred_check_branch
      %145 = sbr.rel (0) target = $region25
    $region24: #{tpu_custom_call.1} parent=1 // pred_region
      %146 = dma.done [#allocation7], 768
    $region25: #{tpu_custom_call.1} parent=1 // pred_fallthru
      _
    %147 = vsyncpa [#allocation3], 1
    %148 = vsyncpa [#allocation4], 1
    %149 = vsyncpa [#allocation7], 1

</llo_original>
